<compile_context>
chip_gen: v6e
topology: v6e:2x2x1
jax: 0.10.0
libtpu: 0.0.40
codegen_flags: <defaults>
</compile_context>

<pallas_src>
import functools

import numpy as np
import jax
import jax.numpy as jnp
from jax.experimental import pallas as pl
from jax.experimental.pallas import tpu as pltpu

_LANE = 128
_SUBLANE = 8


def _round_up(x, a):
    return ((x + a - 1) // a) * a


def _double_n_pair_kernel(pos_ref, a_ref, e_ref, loss_ref, acc_ref, *,
                          n_valid, n_total):
    i = pl.program_id(0)            # anchor block (lane axis)     — parallel
    j = pl.program_id(1)            # embedding-column block       — reduction
    tm = a_ref.shape[0]
    tn = e_ref.shape[0]

    @pl.when(j == 0)
    def _():
        acc_ref[...] = jnp.zeros_like(acc_ref)

    # (tn, tm) score tile: E_block @ A_block^T, contracting over D on the MXU
    # (no explicit transpose of either operand).
    scores = jax.lax.dot_general(
        e_ref[...], a_ref[...],
        dimension_numbers=(((1,), (1,)), ((), ())),
        preferred_element_type=jnp.float32)                     # (tn, tm) f32

    # exp(gram - anchor.positive); pos is a lane-dense (1, tm) row, the
    # broadcast across sublanes is a cheap VPU op.  Matches the reference
    # exactly (no running-max stabilization, just like the PyTorch module).
    expd = jnp.exp(scores - pos_ref[...])                       # (tn, tm) f32

    def fold(x):
        # (tn, tm) -> (8, tm): layout-clean reshape + lane-aligned VPU adds.
        if tn == _SUBLANE:
            return x
        return x.reshape(tn // _SUBLANE, _SUBLANE, tm).sum(axis=0)

    # The excluded column (e-index == 2*anchor) and the zero-padded columns
    # only touch a couple of (i, j) blocks; gate the iota/compare/where work
    # so the steady-state path is just matmul + exp + adds.
    diag_lo = 2 * i * tm
    diag_hi = 2 * i * tm + 2 * (tm - 1)
    needs_mask = jnp.logical_and(j * tn <= diag_hi,
                                 j * tn + (tn - 1) >= diag_lo)
    if n_total > n_valid:
        needs_mask = jnp.logical_or(needs_mask,
                                    j == pl.num_programs(1) - 1)

    @pl.when(needs_mask)
    def _():
        e_idx = j * tn + jax.lax.broadcasted_iota(jnp.int32, (tn, tm), 0)
        a_idx = i * tm + jax.lax.broadcasted_iota(jnp.int32, (tn, tm), 1)
        keep = e_idx != 2 * a_idx
        if n_total > n_valid:
            keep = jnp.logical_and(keep, e_idx < n_valid)
        acc_ref[...] += fold(jnp.where(keep, expd, 0.0))

    @pl.when(jnp.logical_not(needs_mask))
    def _():
        acc_ref[...] += fold(expd)

    # Finalize this row block on the last column block: single cross-sublane
    # reduce + log, stored lane-dense.
    @pl.when(j == pl.num_programs(1) - 1)
    def _():
        total = jnp.sum(acc_ref[...], axis=0, keepdims=True)    # (1, tm)
        loss_ref[...] = jnp.log(total)


def _select_tiles(m, n, d, itemsize, tm=None, tn=None):
    """Pick (tm, tn, vmem_limit_bytes).

    tm = anchor tile (lane axis of the score tile).  It carries all reuse of
    the streamed E blocks (total E traffic = (m_pad/tm) * n_pad * d), so it is
    preferred large.  tn = embedding-column tile (sublane axis); it only
    amortizes per-grid-step overhead, so it is shrunk first under VMEM
    pressure.
    """
    if tm is None:
        if m <= _LANE:
            tm = _round_up(m, _SUBLANE)
        else:
            m_ceil = _round_up(m, _LANE)
            tm = min(512, m_ceil)
            # Guarantee >= 2 row blocks so both v7x TensorCores get work
            # (costs at most one extra E pass for mid-sized m).
            tm = min(tm, max(_LANE, _round_up(m_ceil // 2, _LANE)))
    else:
        tm = _round_up(tm, _SUBLANE)
    if tn is None:
        n_col_blocks = max(1, -(-n // 256))
        tn = _round_up(-(-n // n_col_blocks), _SUBLANE)
    else:
        tn = _round_up(tn, _SUBLANE)

    # Lane-dense (1, tm) pos/loss blocks need tm % 128 == 0 unless there is a
    # single row block.
    if _round_up(m, tm) > tm and tm % _LANE != 0:
        tm = _round_up(tm, _LANE)

    try:
        vmem_cap = int(pltpu.get_tpu_info().vmem_capacity_bytes)
    except Exception:
        vmem_cap = 64 << 20                      # conservative (v7x per-TC)
    budget = min(vmem_cap // 2, 24 << 20)        # fits v7x's 32 MiB scoped

    def footprint(tm_, tn_):
        return (2 * tm_ * d * itemsize           # anchors (double-buffered)
                + 2 * tn_ * d * itemsize         # streamed E column block
                + 4 * _SUBLANE * tm_ * 4         # (1, tm) pos + loss blocks
                + _SUBLANE * tm_ * 4             # (8, tm) accumulator
                + 3 * tm_ * tn_ * 4)             # score / exp temporaries

    # Shrink tn first (never tm — tm carries the E reuse), then tm.
    while footprint(tm, tn) > budget and tn > _SUBLANE:
        tn = max(_SUBLANE, (tn // 2 // _SUBLANE) * _SUBLANE)
    while footprint(tm, tn) > budget and tm > _LANE:
        tm = max(_LANE, (tm // 2 // _LANE) * _LANE)

    vmem_limit = int(min(vmem_cap * 3 // 4, 96 << 20))
    return tm, tn, vmem_limit


def double_n_pair_loss(embeddings, *, tm=None, tn=None, use_bf16_matmul=None,
                       e_buffers=None):
    n, d = embeddings.shape
    assert n % 2 == 0, "DoubleNPair expects an even number of embeddings"
    m = n // 2

    if use_bf16_matmul is None:
        use_bf16_matmul = embeddings.dtype == jnp.bfloat16
    compute_dtype = jnp.bfloat16 if use_bf16_matmul else jnp.float32
    emb = embeddings.astype(compute_dtype)

    anchors = emb[0::2]                                    # (m, d)
    positives = emb[1::2]                                  # (m, d)
    # Tiny wrapper reduction for anchor.positive (f32 accumulation); frees an
    # (tm, d) HBM stream + VMEM double-buffer inside the kernel.
    pos = jnp.sum(anchors.astype(jnp.float32) * positives.astype(jnp.float32),
                  axis=1)                                  # (m,) f32

    itemsize = jnp.dtype(compute_dtype).itemsize
    tm, tn, vmem_limit = _select_tiles(m, n, d, itemsize, tm, tn)

    m_pad = _round_up(m, tm)
    n_pad = _round_up(n, tn)

    anchors_p = jnp.pad(anchors, ((0, m_pad - m), (0, 0)))
    emb_p = jnp.pad(emb, ((0, n_pad - n), (0, 0)))
    pos_p = jnp.pad(pos, (0, m_pad - m)).reshape(1, m_pad)

    row_blocks = m_pad // tm
    col_blocks = n_pad // tn

    cost = pl.CostEstimate(
        flops=2 * m_pad * n_pad * d + 4 * m_pad * n_pad,
        transcendentals=m_pad * n_pad + m_pad,
        # E is re-read once per row block — that is the dominant HBM stream.
        bytes_accessed=(row_blocks * n_pad * d * itemsize
                        + m_pad * d * itemsize + 2 * m_pad * 4),
    )

    # Streamed E-column spec; pl.Buffered(k) knob for when the DMA is exposed
    # (small d / bf16).  Default double-buffering otherwise.
    if e_buffers is not None and e_buffers != 2:
        e_spec = pl.BlockSpec((tn, d), lambda i, j: (j, 0),
                              pipeline_mode=pl.Buffered(e_buffers))
    else:
        e_spec = pl.BlockSpec((tn, d), lambda i, j: (j, 0))

    kernel = functools.partial(_double_n_pair_kernel,
                               n_valid=n, n_total=n_pad)

    per_anchor = pl.pallas_call(
        kernel,
        out_shape=jax.ShapeDtypeStruct((1, m_pad), jnp.float32),
        grid=(row_blocks, col_blocks),
        in_specs=[
            pl.BlockSpec((1, tm), lambda i, j: (0, i)),    # pos (lane-dense)
            pl.BlockSpec((tm, d), lambda i, j: (i, 0)),    # anchors (resident)
            e_spec,                                        # all embeddings
        ],
        out_specs=pl.BlockSpec((1, tm), lambda i, j: (0, i)),
        scratch_shapes=[pltpu.VMEM((_SUBLANE, tm), jnp.float32)],  # exp-sum acc
        compiler_params=pltpu.CompilerParams(
            dimension_semantics=("parallel", "arbitrary"),
            vmem_limit_bytes=vmem_limit),
        cost_estimate=cost,
    )(pos_p, anchors_p, emb_p)

    # aggregation == 'mean' over the real anchor rows (padded rows dropped).
    # TODO(synk): 'valid' aggregation (count of loss > epsilon) not
    # implemented; default Options() aggregation is 'mean' and epsilon is only
    # used by that branch.
    return {"loss": jnp.mean(per_anchor[0, :m])}


def _reference_loss(e_np):
    # Pure-numpy transcription of the PyTorch forward (aggregation='mean').
    e_np = np.asarray(e_np, dtype=np.float32)
    n = e_np.shape[0]
    gram = e_np @ e_np.T
    pos = np.diagonal(gram, offset=1)[0::2][:, None]          # (N/2, 1)
    mask = np.ones((n, n), dtype=bool)
    np.fill_diagonal(mask, False)
    mask[1::2] = False
    all_other = gram[mask].reshape(n // 2, n - 1)
    loss = np.log(np.sum(np.exp(all_other - pos), axis=1))
    return float(np.mean(loss))


if __name__ == "__main__":
    # 1) tiny single-block case (N=8 -> tiles (8, 8), padded anchor rows).
    emb1 = jax.random.normal(jax.random.PRNGKey(0), (8, 32), dtype=jnp.float32)
    loss1 = jax.block_until_ready(double_n_pair_loss(emb1)["loss"])
    np.testing.assert_allclose(np.asarray(loss1), _reference_loss(emb1),
                               rtol=1e-4, atol=1e-4)

    # 2) explicit multi-block grid: m=192 anchors padded to 256 (two 128-row
    #    blocks), six 64-column blocks; exercises the gated diagonal mask and
    #    the padded-anchor rows.
    emb2 = jax.random.normal(jax.random.PRNGKey(1), (384, 128), dtype=jnp.float32)
    emb2 = emb2 / jnp.linalg.norm(emb2, axis=1, keepdims=True)
    loss2 = jax.block_until_ready(
        double_n_pair_loss(emb2, tm=128, tn=64)["loss"])
    np.testing.assert_allclose(np.asarray(loss2), _reference_loss(emb2),
                               rtol=1e-4, atol=1e-4)

    # 3) odd sizes -> row and column padding with default tile selection.
    emb3 = jax.random.normal(jax.random.PRNGKey(2), (30, 32), dtype=jnp.float32)
    emb3 = emb3 / jnp.linalg.norm(emb3, axis=1, keepdims=True)
    loss3 = jax.block_until_ready(double_n_pair_loss(emb3)["loss"])
    np.testing.assert_allclose(np.asarray(loss3), _reference_loss(emb3),
                               rtol=1e-4, atol=1e-4)

    # 4) bf16 MXU path (f32 reference, loose tolerance), 2x2 block grid.
    emb4 = jax.random.normal(jax.random.PRNGKey(3), (512, 256), dtype=jnp.float32)
    emb4 = emb4 / jnp.linalg.norm(emb4, axis=1, keepdims=True)
    loss4 = jax.block_until_ready(
        double_n_pair_loss(emb4, use_bf16_matmul=True)["loss"])
    np.testing.assert_allclose(np.asarray(loss4), _reference_loss(emb4),
                               rtol=3e-2, atol=3e-2)

    print("KERNEL_OK")
</pallas_src>

<mosaic_0001>
module attributes {stable_mosaic.version = 11 : i64} {
  func.func @_double_n_pair_kernel(%arg0: i32, %arg1: i32, %arg2: memref<1x8xf32, #tpu.memory_space<vmem>>, %arg3: memref<8x32xf32, #tpu.memory_space<vmem>>, %arg4: memref<8x32xf32, #tpu.memory_space<vmem>>, %arg5: memref<1x8xf32, #tpu.memory_space<vmem>>, %arg6: memref<8x8xf32, #tpu.memory_space<vmem>>) attributes {dimension_semantics = [#tpu.dimension_semantics<parallel>, #tpu.dimension_semantics<arbitrary>], iteration_bounds = array<i64: 1, 1>, scalar_prefetch = 0 : i64, scratch_operands = 1 : i64, tpu.core_type = #tpu.core_type<tc>, window_params = [{transform_indices = @transform_0, window_bounds = array<i64: 1, 8>}, {transform_indices = @transform_1, window_bounds = array<i64: 8, 32>}, {transform_indices = @transform_2, window_bounds = array<i64: 8, 32>}, {transform_indices = @transform_3, window_bounds = array<i64: 1, 8>}]} {
    %c0_i32 = arith.constant 0 : i32
    %0 = arith.cmpi eq, %arg1, %c0_i32 : i32
    %1 = arith.extui %0 : i1 to i32
    %c0_i32_0 = arith.constant 0 : i32
    %2 = arith.cmpi ne, %1, %c0_i32_0 : i32
    scf.if %2 {
      %cst_14 = arith.constant 0.000000e+00 : f32
      %29 = vector.broadcast %cst_14 : f32 to vector<8x8xf32>
      %c0_15 = arith.constant 0 : index
      %c0_16 = arith.constant 0 : index
      %30 = vector.load %arg6[%c0_15, %c0_16] : memref<8x8xf32, #tpu.memory_space<vmem>>, vector<8x8xf32>
      tpu.vector_store %arg6[%c0_15, %c0_16], %29 {strides = array<i32>} : memref<8x8xf32, #tpu.memory_space<vmem>>, vector<8x8xf32>,
    } else {
    }
    %c0 = arith.constant 0 : index
    %c0_1 = arith.constant 0 : index
    %3 = vector.load %arg4[%c0, %c0_1] : memref<8x32xf32, #tpu.memory_space<vmem>>, vector<8x32xf32>
    %c0_2 = arith.constant 0 : index
    %c0_3 = arith.constant 0 : index
    %4 = vector.load %arg3[%c0_2, %c0_3] : memref<8x32xf32, #tpu.memory_space<vmem>>, vector<8x32xf32>
    %cst = arith.constant dense<0.000000e+00> : vector<8x8xf32>
    %5 = tpu.matmul %3, %4, %cst {dimension_numbers = #tpu.dot_dimension_numbers<[1], [1], [0], [0], [0, 0, 1, 0], [], []>} : vector<8x32xf32>, vector<8x32xf32>, vector<8x8xf32> -> vector<8x8xf32>
    %c0_4 = arith.constant 0 : index
    %c0_5 = arith.constant 0 : index
    %6 = vector.load %arg2[%c0_4, %c0_5] : memref<1x8xf32, #tpu.memory_space<vmem>>, vector<1x8xf32>
    %7 = vector.broadcast %6 : vector<1x8xf32> to vector<8x8xf32>
    %8 = arith.subf %5, %7 : vector<8x8xf32>
    %9 = math.exp %8 : vector<8x8xf32>
    %c2_i32 = arith.constant 2 : i32
    %10 = arith.muli %c2_i32, %arg0 : i32
    %c8_i32 = arith.constant 8 : i32
    %11 = arith.muli %10, %c8_i32 : i32
    %c2_i32_6 = arith.constant 2 : i32
    %12 = arith.muli %c2_i32_6, %arg0 : i32
    %c8_i32_7 = arith.constant 8 : i32
    %13 = arith.muli %12, %c8_i32_7 : i32
    %c14_i32 = arith.constant 14 : i32
    %14 = arith.addi %13, %c14_i32 : i32
    %c8_i32_8 = arith.constant 8 : i32
    %15 = arith.muli %arg1, %c8_i32_8 : i32
    %16 = arith.cmpi sle, %15, %14 : i32
    %c8_i32_9 = arith.constant 8 : i32
    %17 = arith.muli %arg1, %c8_i32_9 : i32
    %c7_i32 = arith.constant 7 : i32
    %18 = arith.addi %17, %c7_i32 : i32
    %19 = arith.cmpi sge, %18, %11 : i32
    %20 = arith.andi %16, %19 : i1
    %21 = arith.extui %20 : i1 to i32
    %c0_i32_10 = arith.constant 0 : i32
    %22 = arith.cmpi ne, %21, %c0_i32_10 : i32
    scf.if %22 {
      %c8_i32_14 = arith.constant 8 : i32
      %29 = arith.muli %arg1, %c8_i32_14 : i32
      %30 = tpu.iota {dimensions = array<i32: 0>} : vector<8x8xi32>
      %31 = vector.broadcast %29 : i32 to vector<8x8xi32>
      %32 = arith.addi %31, %30 : vector<8x8xi32>
      %c8_i32_15 = arith.constant 8 : i32
      %33 = arith.muli %arg0, %c8_i32_15 : i32
      %34 = tpu.iota {dimensions = array<i32: 1>} : vector<8x8xi32>
      %35 = vector.broadcast %33 : i32 to vector<8x8xi32>
      %36 = arith.addi %35, %34 : vector<8x8xi32>
      %c2_i32_16 = arith.constant 2 : i32
      %37 = vector.broadcast %c2_i32_16 : i32 to vector<8x8xi32>
      %38 = arith.muli %37, %36 : vector<8x8xi32>
      %39 = arith.cmpi ne, %32, %38 : vector<8x8xi32>
      %c0_17 = arith.constant 0 : index
      %c0_18 = arith.constant 0 : index
      %40 = vector.load %arg6[%c0_17, %c0_18] : memref<8x8xf32, #tpu.memory_space<vmem>>, vector<8x8xf32>
      %cst_19 = arith.constant 0.000000e+00 : f32
      %41 = vector.broadcast %cst_19 : f32 to vector<8x8xf32>
      %42 = arith.select %39, %9, %41 : vector<8x8xi1>, vector<8x8xf32>
      %43 = arith.addf %40, %42 : vector<8x8xf32>
      %c0_20 = arith.constant 0 : index
      %c0_21 = arith.constant 0 : index
      %44 = vector.load %arg6[%c0_20, %c0_21] : memref<8x8xf32, #tpu.memory_space<vmem>>, vector<8x8xf32>
      tpu.vector_store %arg6[%c0_20, %c0_21], %43 {strides = array<i32>} : memref<8x8xf32, #tpu.memory_space<vmem>>, vector<8x8xf32>,
    } else {
    }
    %true = arith.constant true
    %23 = arith.xori %20, %true : i1
    %24 = arith.extui %23 : i1 to i32
    %c0_i32_11 = arith.constant 0 : i32
    %25 = arith.cmpi ne, %24, %c0_i32_11 : i32
    scf.if %25 {
      %c0_14 = arith.constant 0 : index
      %c0_15 = arith.constant 0 : index
      %29 = vector.load %arg6[%c0_14, %c0_15] : memref<8x8xf32, #tpu.memory_space<vmem>>, vector<8x8xf32>
      %30 = arith.addf %29, %9 : vector<8x8xf32>
      %c0_16 = arith.constant 0 : index
      %c0_17 = arith.constant 0 : index
      %31 = vector.load %arg6[%c0_16, %c0_17] : memref<8x8xf32, #tpu.memory_space<vmem>>, vector<8x8xf32>
      tpu.vector_store %arg6[%c0_16, %c0_17], %30 {strides = array<i32>} : memref<8x8xf32, #tpu.memory_space<vmem>>, vector<8x8xf32>,
    } else {
    }
    %c0_i32_12 = arith.constant 0 : i32
    %26 = arith.cmpi eq, %arg1, %c0_i32_12 : i32
    %27 = arith.extui %26 : i1 to i32
    %c0_i32_13 = arith.constant 0 : i32
    %28 = arith.cmpi ne, %27, %c0_i32_13 : i32
    scf.if %28 {
      %c0_14 = arith.constant 0 : index
      %c0_15 = arith.constant 0 : index
      %29 = vector.load %arg6[%c0_14, %c0_15] : memref<8x8xf32, #tpu.memory_space<vmem>>, vector<8x8xf32>
      %cst_16 = arith.constant dense<0.000000e+00> : vector<8xf32>
      %30 = vector.multi_reduction <add>, %29, %cst_16 [0] : vector<8x8xf32> to vector<8xf32>
      %31 = vector.shape_cast %30 : vector<8xf32> to vector<1x8xf32>
      %32 = math.log %31 : vector<1x8xf32>
      %c0_17 = arith.constant 0 : index
      %c0_18 = arith.constant 0 : index
      %33 = vector.load %arg5[%c0_17, %c0_18] : memref<1x8xf32, #tpu.memory_space<vmem>>, vector<1x8xf32>
      tpu.vector_store %arg5[%c0_17, %c0_18], %32 {strides = array<i32>} : memref<1x8xf32, #tpu.memory_space<vmem>>, vector<1x8xf32>,
    } else {
    }
    return
  }
  func.func @transform_0(%arg0: i32, %arg1: i32) -> (i32, i32) {
    %c0_i32 = arith.constant 0 : i32
    %c0_i32_0 = arith.constant 0 : i32
    return %c0_i32, %arg0 : i32, i32
  }
  func.func @transform_1(%arg0: i32, %arg1: i32) -> (i32, i32) {
    %c0_i32 = arith.constant 0 : i32
    %c0_i32_0 = arith.constant 0 : i32
    return %arg0, %c0_i32 : i32, i32
  }
  func.func @transform_2(%arg0: i32, %arg1: i32) -> (i32, i32) {
    %c0_i32 = arith.constant 0 : i32
    %c0_i32_0 = arith.constant 0 : i32
    return %arg1, %c0_i32 : i32, i32
  }
  func.func @transform_3(%arg0: i32, %arg1: i32) -> (i32, i32) {
    %c0_i32 = arith.constant 0 : i32
    %c0_i32_0 = arith.constant 0 : i32
    return %c0_i32, %arg0 : i32, i32
  }
}

</mosaic_0001>

<llo_original>
// kernel: tpu_custom_call.1
$region0: #{tpu_custom_call.1}
  #allocation0 [shape = 'u32[]', space=smem, size = 0x4, offset = 0x4, fixed_abs, tag = 'smem constant byte address 0x4 - core index']
  #allocation1 [shape = 'u32[144,128]{1,0:T(1,128)}', space=vmem, size = 0x12000, scoped, tag = 'internal scratch']
  #allocation2 [shape = 'f32[8,8]{1,0:T(8,128)}', space=vmem, size = 0x1000, scoped, tag = 'scratch operand']
  %s0 = inlined_call_operand.hbm [shape: f32[1,8], index: 0, kind: input, shape index: {}]
  %s1 = inlined_call_operand.hbm [shape: f32[8,32], index: 1, kind: input, shape index: {}]
  %s2 = inlined_call_operand.hbm [shape: f32[8,32], index: 2, kind: input, shape index: {}]
  %s3 = inlined_call_operand.hbm [shape: f32[1,8], index: 3, kind: output, shape index: {}]
  %s4 = sld [smem:[#allocation0]]
  $region50: #{tpu_custom_call.1} parent=0
    _
  %s6 = ssub.s32 1, %s4
  %s7 = scalar_select 0, %s6, %s4
  $region1: #{tpu_custom_call.1} parent=0
    #allocation3 [shape = 'u8[512]{0}', space=vmem, size = 0x400, scoped, tag = 'input window, operand 0, single buffered']
    #allocation4 [shape = 's32[1]{0}', space=sflag, size = 0x4, scoped, tag = 'scoped memory for tpu_custom_call.1']
    #allocation5 [shape = 's32[1]{0}', space=sflag, size = 0x4, scoped, tag = 'scoped memory for tpu_custom_call.1']
    #allocation6 [shape = 'u8[4096]{0}', space=vmem, size = 0x1000, scoped, tag = 'input window, operand 1, single buffered']
    #allocation7 [shape = 's32[1]{0}', space=sflag, size = 0x4, scoped, tag = 'scoped memory for tpu_custom_call.1']
    #allocation8 [shape = 'u8[4096]{0}', space=vmem, size = 0x1000, scoped, tag = 'input window, operand 2, single buffered']
    #allocation9 [shape = 'u8[512]{0}', space=vmem, size = 0x400, scoped, tag = 'output window, operand 0, single buffered']
    %8 = vsyncpa [#allocation4], 0
    %9 = vsyncpa [#allocation7], 0
    %10 = vsyncpa [#allocation5], 0
    // Predicated region
    $region2: #{tpu_custom_call.1} parent=1 // pred_check
      _
    $region3: #{tpu_custom_call.1} parent=1 // pred_check_branch
      %12 = sbr.rel (0) target = $region5
    $region4: #{tpu_custom_call.1} parent=1 // pred_region
      %s14 = ssub.s32 16, 16
      %15 = vsyncadd [#allocation4], %s14
      %s17 = sshll.u32 [#allocation3], 4
      %s18 = int_to_ptr.vmem [resolvable:$true] %s17
      %20 = dma.hbm_to_vmem [thread:$0]  %s0, 16, %s18, [#allocation4]
    $region5: #{tpu_custom_call.1} parent=1 // pred_fallthru
      _
    // Predicated region
    $region6: #{tpu_custom_call.1} parent=1 // pred_check
      _
    $region7: #{tpu_custom_call.1} parent=1 // pred_check_branch
      %22 = sbr.rel (0) target = $region9
    $region8: #{tpu_custom_call.1} parent=1 // pred_region
      %s24 = ssub.s32 128, 128
      %25 = vsyncadd [#allocation7], %s24
      %s27 = sshll.u32 [#allocation6], 4
      %s28 = int_to_ptr.vmem [resolvable:$true] %s27
      %30 = dma.hbm_to_vmem [thread:$0]  %s1, 128, %s28, [#allocation7]
    $region9: #{tpu_custom_call.1} parent=1 // pred_fallthru
      _
    // Predicated region
    $region10: #{tpu_custom_call.1} parent=1 // pred_check
      _
    $region11: #{tpu_custom_call.1} parent=1 // pred_check_branch
      %32 = sbr.rel (0) target = $region13
    $region12: #{tpu_custom_call.1} parent=1 // pred_region
      %s34 = ssub.s32 128, 128
      %35 = vsyncadd [#allocation7], %s34
      %s37 = sshll.u32 [#allocation8], 4
      %s38 = int_to_ptr.vmem [resolvable:$true] %s37
      %40 = dma.hbm_to_vmem [thread:$0]  %s2, 128, %s38, [#allocation7]
    $region13: #{tpu_custom_call.1} parent=1 // pred_fallthru
      _
    // Predicated region
    $region14: #{tpu_custom_call.1} parent=1 // pred_check
      _
    $region15: #{tpu_custom_call.1} parent=1 // pred_check_branch
      %42 = sbr.rel (0) target = $region17
    $region16: #{tpu_custom_call.1} parent=1 // pred_region
      %43 = dma.done [#allocation4], 16
    $region17: #{tpu_custom_call.1} parent=1 // pred_fallthru
      _
    // Predicated region
    $region18: #{tpu_custom_call.1} parent=1 // pred_check
      _
    $region19: #{tpu_custom_call.1} parent=1 // pred_check_branch
      %45 = sbr.rel (0) target = $region21
    $region20: #{tpu_custom_call.1} parent=1 // pred_region
      %46 = dma.done [#allocation7], 128
    $region21: #{tpu_custom_call.1} parent=1 // pred_fallthru
      _
    // Predicated region
    $region22: #{tpu_custom_call.1} parent=1 // pred_check
      _
    $region23: #{tpu_custom_call.1} parent=1 // pred_check_branch
      %48 = sbr.rel (0) target = $region25
    $region24: #{tpu_custom_call.1} parent=1 // pred_region
      %49 = dma.done [#allocation7], 128
    $region25: #{tpu_custom_call.1} parent=1 // pred_fallthru
      _
    %p50 = scmp.eq.s32.totalorder 0, 0
    // Predicated region
    $region26: #{tpu_custom_call.1} parent=1 // pred_check
      %p51 = pneg %p50
    $region27: #{tpu_custom_call.1} parent=1 // pred_check_branch
      %53 = sbr.rel (%p51) target = $region29
    $region28: #{tpu_custom_call.1} parent=1 // pred_region
      %vm54 = vcmask 64512
      %55 = vst.msk [vmem:[#allocation2] sm:$0xff] %vm54, 0.0
    $region29: #{tpu_custom_call.1} parent=1 // pred_fallthru
      _
    %v56 = vld [vmem:[#allocation8] sm:$0xff]
    %v57 = vld [vmem:[#allocation6] sm:$0xff]
    %vm58 = vcmask 261120
    %v60 = vsel %vm58, %v56, 0
    %v63 = vsel %vm58, %v57, 0
    %65 = vmatprep.subr.mxu0 0.0
    %66 = vmatpush1.xpose.msra.mxu0 0.0
    %67 = vmatprep.subr.mxu0 0.0
    %68 = vmatpush1.xpose.msra.mxu0 0.0
    %69 = vmatprep.subr.mxu0 0.0
    %70 = vmatpush1.xpose.msra.mxu0 0.0
    %71 = vmatprep.subr.mxu0 0.0
    %72 = vmatpush1.xpose.msra.mxu0 0.0
    %73 = vmatprep.subr.mxu0 0.0
    %74 = vmatpush1.xpose.msra.mxu0 0.0
    %75 = vmatprep.subr.mxu0 0.0
    %76 = vmatpush1.xpose.msra.mxu0 0.0
    %77 = vmatprep.subr.mxu0 0.0
    %78 = vmatpush1.xpose.msra.mxu0 0.0
    %79 = vmatprep.subr.mxu0 0.0
    %80 = vmatpush1.xpose.msra.mxu0 0.0
    %81 = vmatprep.subr.mxu0 0.0
    %82 = vmatpush1.xpose.msra.mxu0 0.0
    %83 = vmatprep.subr.mxu0 0.0
    %84 = vmatpush1.xpose.msra.mxu0 0.0
    %85 = vmatprep.subr.mxu0 0.0
    %86 = vmatpush1.xpose.msra.mxu0 0.0
    %87 = vmatprep.subr.mxu0 0.0
    %88 = vmatpush1.xpose.msra.mxu0 0.0
    %89 = vmatprep.subr.mxu0 0.0
    %90 = vmatpush1.xpose.msra.mxu0 0.0
    %91 = vmatprep.subr.mxu0 0.0
    %92 = vmatpush1.xpose.msra.mxu0 0.0
    %93 = vmatprep.subr.mxu0 0.0
    %94 = vmatpush1.xpose.msra.mxu0 0.0
    %95 = vmatprep.subr.mxu0 0.0
    %96 = vmatpush1.xpose.msra.mxu0 %v63
    %97 = vmatprep.subr.mxu0 0.0
    %98 = vmatpush2.xpose.msra.mxu0 0.0
    %99 = vmatprep.subr.mxu0 0.0
    %100 = vmatpush2.xpose.msra.mxu0 0.0
    %101 = vmatprep.subr.mxu0 0.0
    %102 = vmatpush2.xpose.msra.mxu0 0.0
    %103 = vmatprep.subr.mxu0 0.0
    %104 = vmatpush2.xpose.msra.mxu0 0.0
    %105 = vmatprep.subr.mxu0 0.0
    %106 = vmatpush2.xpose.msra.mxu0 0.0
    %107 = vmatprep.subr.mxu0 0.0
    %108 = vmatpush2.xpose.msra.mxu0 0.0
    %109 = vmatprep.subr.mxu0 0.0
    %110 = vmatpush2.xpose.msra.mxu0 0.0
    %111 = vmatprep.subr.mxu0 0.0
    %112 = vmatpush2.xpose.msra.mxu0 0.0
    %113 = vmatprep.subr.mxu0 0.0
    %114 = vmatpush2.xpose.msra.mxu0 0.0
    %115 = vmatprep.subr.mxu0 0.0
    %116 = vmatpush2.xpose.msra.mxu0 0.0
    %117 = vmatprep.subr.mxu0 0.0
    %118 = vmatpush2.xpose.msra.mxu0 0.0
    %119 = vmatprep.subr.mxu0 0.0
    %120 = vmatpush2.xpose.msra.mxu0 0.0
    %121 = vmatprep.subr.mxu0 0.0
    %122 = vmatpush2.xpose.msra.mxu0 0.0
    %123 = vmatprep.subr.mxu0 0.0
    %124 = vmatpush2.xpose.msra.mxu0 0.0
    %125 = vmatprep.subr.mxu0 0.0
    %126 = vmatpush2.xpose.msra.mxu0 0.0
    %127 = vmatprep.subr.mxu0 0.0
    %128 = vmatpush2.xpose.msra.mxu0 0.0
    %129 = vmatprep.mubr.f32.mxu0 0.0
    %130 = vmatmul.mubr.f32.gmra.mxu0 %v60
    %v131 = vpop.f32.mrf.mxu0
    %v132 = vadd.f32 0.0, %v131
    %v133 = vpop.f32.mrf.mxu0
    %134 = vdwg.mxu0
    %v135 = vld [vmem:[#allocation3] sm:$0x1]
    %v137 = vlaneseq
    %v138 = vshrl.u32 %v137, 7
    %v139 = vsub.s32 0, %v138
    %v140 = vrot.slane %v135, %v139
    %v142 = vsub.f32 %v132, %v140
    %v143 = vmul.f32 %v142, 1.442695
    %v144 = vpow.pop %v143
    %s145 = smul.u32 0, 16
    %s146 = sadd.s32 %s145, 14
    %s147 = smul.u32 0, 8
    %p148 = scmp.le.s32.totalorder %s147, %s146
    %s149 = sadd.s32 %s147, 7
    %p150 = scmp.ge.s32.totalorder %s149, %s145
    %p151 = pnand %p148, %p150
    %p152 = pneg %p151
    // Predicated region
    $region30: #{tpu_custom_call.1} parent=1 // pred_check
      _
    $region31: #{tpu_custom_call.1} parent=1 // pred_check_branch
      %154 = sbr.rel (%p151) target = $region33
    $region32: #{tpu_custom_call.1} parent=1 // pred_region
      %v155 = vlaneseq
      %v156 = vshrl.u32 %v155, 7
      %v157 = vstv %s147
      %v158 = vadd.s32 %v157, %v156
      %s159 = smul.u32 0, 8
      %v160 = vlaneseq
      %v161 = vand.u32 %v160, 127
      %v162 = vstv %s159
      %v163 = vadd.s32 %v162, %v161
      %v164 = vmul.u32 %v163, 2
      %vm165 = vcmp.ne.s32.totalorder %v158, %v164
      %v166 = vld [vmem:[#allocation2] sm:$0xff]
      %v167 = vsel %vm165, %v144, 0.0
      %v168 = vadd.f32 %v166, %v167
      %vm169 = vcmask 64512
      %170 = vst.msk [vmem:[#allocation2] sm:$0xff] %vm169, %v168
    $region33: #{tpu_custom_call.1} parent=1 // pred_fallthru
      _
    %p171 = pneg %p152
    // Predicated region
    $region34: #{tpu_custom_call.1} parent=1 // pred_check
      _
    $region35: #{tpu_custom_call.1} parent=1 // pred_check_branch
      %173 = sbr.rel (%p152) target = $region37
    $region36: #{tpu_custom_call.1} parent=1 // pred_region
      %v174 = vld [vmem:[#allocation2] sm:$0xff]
      %v175 = vadd.f32 %v174, %v144
      %vm176 = vcmask 64512
      %177 = vst.msk [vmem:[#allocation2] sm:$0xff] %vm176, %v175
    $region37: #{tpu_custom_call.1} parent=1 // pred_fallthru
      _
    // Predicated region
    $region38: #{tpu_custom_call.1} parent=1 // pred_check
      %p178 = pneg %p50
    $region39: #{tpu_custom_call.1} parent=1 // pred_check_branch
      %180 = sbr.rel (%p178) target = $region41
    $region40: #{tpu_custom_call.1} parent=1 // pred_region
      %v181 = vld [vmem:[#allocation2] sm:$0xff]
      %vm182 = vcmask 64512
      %v183 = vsel %vm182, %v181, 0.0
      %v184 = vrot.slane %v183, 4
      %v185 = vadd.f32 %v183, %v184
      %v186 = vrot.slane %v185, 2
      %v187 = vadd.f32 %v185, %v186
      %v188 = vrot.slane %v187, 1
      %v189 = vadd.f32 %v187, %v188
      %v190 = vlog2.pop %v189
      %v191 = vmul.f32 %v190, 0.6931472
      %vm192 = vcmask 57344
      %193 = vst.msk [vmem:[#allocation9] sm:$0x1] %vm192, %v191
    $region41: #{tpu_custom_call.1} parent=1 // pred_fallthru
      _
    // Predicated region
    $region42: #{tpu_custom_call.1} parent=1 // pred_check
      _
    $region43: #{tpu_custom_call.1} parent=1 // pred_check_branch
      %195 = sbr.rel (0) target = $region45
    $region44: #{tpu_custom_call.1} parent=1 // pred_region
      %s197 = ssub.s32 16, 16
      %198 = vsyncadd [#allocation5], %s197
      %s200 = sshll.u32 [#allocation9], 4
      %s201 = int_to_ptr.vmem [resolvable:$true] %s200
      %203 = dma.vmem_to_hbm [thread:$0]  %s201, 16, %s3, [#allocation5]
    $region45: #{tpu_custom_call.1} parent=1 // pred_fallthru
      _
    // Predicated region
    $region46: #{tpu_custom_call.1} parent=1 // pred_check
      _
    $region47: #{tpu_custom_call.1} parent=1 // pred_check_branch
      %205 = sbr.rel (0) target = $region49
    $region48: #{tpu_custom_call.1} parent=1 // pred_region
      %206 = dma.done [#allocation5], 16
    $region49: #{tpu_custom_call.1} parent=1 // pred_fallthru
      _
    %207 = vsyncpa [#allocation4], 1
    %208 = vsyncpa [#allocation7], 1
    %209 = vsyncpa [#allocation5], 1

</llo_original>
